<compile_context>
chip_gen: v7x
topology: tpu7x:2x2x1
jax: 0.10.0
libtpu: 0.0.40
codegen_flags: <defaults>
</compile_context>

<pallas_src>
import functools

import jax
import jax.numpy as jnp
from jax.experimental import pallas as pl
from jax.experimental.pallas import tpu as pltpu


def _attention_kernel(hidp_ref, ann_ref, w1a_ref, w2_ref, out_ref, scores_sc,
                      *, approx_recip):
    # hidp_ref : (Bt, H)  f32      hidden @ W1[:, :H].T + b1 (hoisted to wrapper)
    # ann_ref  : (Bt, St, H)       annotations tile (bf16 or f32)
    # w1a_ref  : (H, H)            W1[:, H:].T  (annotations half), same dtype
    # w2_ref   : (1, H)   f32      second linear's weight row (b2 dropped:
    #                              softmax is shift-invariant)
    # out_ref  : (NS, Bt, St) f32  softmax weights, written once per batch block
    # scores_sc: (NS, Bt, St) f32  per-S-tile score stash (persists across s)
    s_idx = pl.program_id(1)
    n_s = pl.num_programs(1)
    Bt, St, H = ann_ref.shape

    # Annotations-half projection with f32 accumulation on the MXU.
    sublane_tile = 8 * (4 // jnp.dtype(ann_ref.dtype).itemsize)
    if Bt == 1 or St % sublane_tile == 0:
        # (Bt*St, H) @ (H, H): the reshape is a zero-cost sublane-aligned view.
        ann2d = ann_ref[...].reshape(Bt * St, H)
        ann_proj = jnp.dot(ann2d, w1a_ref[...],
                           preferred_element_type=jnp.float32).reshape(Bt, St, H)
    else:
        # Misaligned tile (e.g. odd S with packed dtypes): per-batch-row 2D
        # matmuls instead of a sublane-repacking reshape.  Never hit by the
        # shapes the wrapper picks; safety net only.
        ann = ann_ref[...]
        rows = [jnp.dot(ann[i], w1a_ref[...], preferred_element_type=jnp.float32)
                for i in range(Bt)]
        ann_proj = jnp.stack(rows, axis=0)

    pre = ann_proj + hidp_ref[...][:, None, :]        # (Bt, St, H) f32
    act = jnp.maximum(pre, 0.0)                       # ReLU

    # Second linear (H -> 1): VPU multiply + lane reduce (no N=1 MXU pass).
    scores = jnp.sum(act * w2_ref[...][None, :, :], axis=-1)   # (Bt, St) f32
    scores_sc[s_idx] = scores                         # leading-axis dynamic store

    # Softmax over the full seq axis once every S tile of this batch block is in.
    @pl.when(s_idx == n_s - 1)
    def _finalize():
        sc = scores_sc[...]                           # (NS, Bt, St)
        m = jnp.max(sc, axis=-1, keepdims=True)       # lane reduce (XLU)
        m = jnp.max(m, axis=0, keepdims=True)         # across S tiles (VPU)
        e = jnp.exp(sc - m)                           # EUP
        denom = jnp.sum(e, axis=-1, keepdims=True)
        denom = jnp.sum(denom, axis=0, keepdims=True)  # (1, Bt, 1)
        out_ref[...] = (e * pl.reciprocal(denom, approx=approx_recip)
                        ).astype(out_ref.dtype)


def _pick_block_b(B):
    """Multiple of 8 dividing B (keeping >= 2 batch blocks when possible), else B."""
    cands = [d for d in range(8, min(B, 64) + 1, 8) if B % d == 0]
    if not cands:
        return B
    for bb in sorted(cands, reverse=True):
        if B // bb >= 2:          # keep >= 2 grid steps for the two v7x TensorCores
            return bb
    return max(cands)


def _pick_s_tile(S, block_b, H, ann_bytes, vmem_budget):
    """Largest divisor of S, multiple of 8 (16 for bf16), fitting the VMEM budget."""
    def est(st):
        ann = 2 * block_b * st * H * ann_bytes        # double-buffered annotations tile
        inter = 3 * block_b * st * H * 4              # f32 proj / pre / act temporaries
        wts = 2 * H * H * ann_bytes + 8 * H * 4       # W1a (double-buffered) + small rows
        misc = 2 * block_b * H * 4 + 4 * block_b * S * 4 + (2 << 20)
        return ann + inter + wts + misc

    steps = (16, 8) if ann_bytes == 2 else (8,)
    for step in steps:
        cands = [d for d in range(step, S + 1, step) if S % d == 0]
        fitting = [d for d in cands if est(d) <= vmem_budget]
        if fitting:
            return max(fitting)
        if cands:
            return min(cands)     # nothing fits the budget; smallest legal tile
    return S                      # S not a multiple of 8: single full-S tile


def attention_forward(hidden, annotations, w1, b1, w2, b2=None, *,
                      use_bf16=False, approx_softmax_recip=False,
                      block_b=None, s_tile=None):
    """hidden: (B,H); annotations: (B,S,H); w1: (H,2H); b1: (H,); w2: (1,H)."""
    B, S, H = annotations.shape
    assert hidden.shape == (B, H)
    del b2  # softmax shift-invariance makes the scalar output bias a no-op

    hidden = hidden.astype(jnp.float32)
    annotations = annotations.astype(jnp.float32)
    w1 = w1.astype(jnp.float32)

    # Hoisted hidden-half projection: one full-batch XLA matmul, f32.
    hid_proj = hidden @ jnp.transpose(w1[:, :H]) + b1.astype(jnp.float32)[None, :]
    w1a_t = jnp.transpose(w1[:, H:])                       # (H, H)
    w2_r = w2.reshape(1, H).astype(jnp.float32)            # (1, H)

    ann_dtype = jnp.bfloat16 if use_bf16 else jnp.float32
    ann_in = annotations.astype(ann_dtype)
    w1a_in = w1a_t.astype(ann_dtype)
    ann_bytes = jnp.dtype(ann_dtype).itemsize

    # ---- tile selection, budgeted against this generation's VMEM -----------
    try:
        vmem_cap = int(pltpu.get_tpu_info().vmem_capacity_bytes)
    except Exception:
        vmem_cap = 64 * 1024 * 1024                        # conservative (v7x-sized)
    vmem_budget = int(vmem_cap * 0.6)

    if block_b is None:
        block_b = _pick_block_b(B)
    assert B % block_b == 0
    if s_tile is None:
        s_tile = _pick_s_tile(S, block_b, H, ann_bytes, vmem_budget)
    assert S % s_tile == 0
    nb, ns = B // block_b, S // s_tile

    kernel = functools.partial(_attention_kernel, approx_recip=approx_softmax_recip)

    out_tiled = pl.pallas_call(
        kernel,
        out_shape=jax.ShapeDtypeStruct((ns, B, s_tile), jnp.float32),
        grid_spec=pltpu.PrefetchScalarGridSpec(
            num_scalar_prefetch=0,
            grid=(nb, ns),
            in_specs=[
                pl.BlockSpec((block_b, H), lambda b, s: (b, 0)),             # hid_proj
                pl.BlockSpec((block_b, s_tile, H), lambda b, s: (b, s, 0)),  # annotations
                pl.BlockSpec((H, H), lambda b, s: (0, 0)),                   # W1 annot half
                pl.BlockSpec((1, H), lambda b, s: (0, 0)),                   # w2 row
            ],
            out_specs=pl.BlockSpec((ns, block_b, s_tile), lambda b, s: (0, b, 0)),
            scratch_shapes=[pltpu.VMEM((ns, block_b, s_tile), jnp.float32)],
        ),
        compiler_params=pltpu.CompilerParams(
            dimension_semantics=("parallel", "arbitrary"),
            vmem_limit_bytes=min(int(vmem_cap * 3 // 4), 96 * 1024 * 1024),
        ),
    )(hid_proj, ann_in, w1a_in, w2_r)

    # Layout plumbing only (tiny): (ns, B, s_tile) -> (B, S, 1).
    out = jnp.transpose(out_tiled, (1, 0, 2)).reshape(B, S)
    return out[:, :, None]


def _reference(hidden, annotations, w1, b1, w2, b2):
    """Plain-JAX reference mirroring the PyTorch forward."""
    B, S, H = annotations.shape
    expanded_hidden = jnp.broadcast_to(hidden[:, None, :], (B, S, H))
    concat = jnp.concatenate([expanded_hidden, annotations], axis=2)   # (B, S, 2H)
    x = concat @ w1.T + b1                                             # (B, S, H)
    x = jnp.maximum(x, 0.0)
    scores = x @ w2.T + b2                                             # (B, S, 1)
    return jax.nn.softmax(scores, axis=1)


def _run_case(key, B, S, H, use_bf16, approx, atol):
    k_hid, k_ann, k_w1, k_b1, k_w2, k_b2 = jax.random.split(key, 6)
    hidden = jax.random.normal(k_hid, (B, H), dtype=jnp.float32)
    annotations = jax.random.normal(k_ann, (B, S, H), dtype=jnp.float32)

    # Deterministic parameter init (PyTorch nn.Linear-style uniform bounds).
    bound1 = 1.0 / jnp.sqrt(2.0 * H)
    w1 = jax.random.uniform(k_w1, (H, 2 * H), minval=-bound1, maxval=bound1, dtype=jnp.float32)
    b1 = jax.random.uniform(k_b1, (H,), minval=-bound1, maxval=bound1, dtype=jnp.float32)
    bound2 = 1.0 / jnp.sqrt(float(H))
    w2 = jax.random.uniform(k_w2, (1, H), minval=-bound2, maxval=bound2, dtype=jnp.float32)
    b2 = jax.random.uniform(k_b2, (1,), minval=-bound2, maxval=bound2, dtype=jnp.float32)

    out = attention_forward(hidden, annotations, w1, b1, w2, b2,
                            use_bf16=use_bf16, approx_softmax_recip=approx)
    out = jax.block_until_ready(out)
    ref = _reference(hidden, annotations, w1, b1, w2, b2)

    assert out.shape == (B, S, 1), out.shape
    assert jnp.allclose(out, ref, atol=atol, rtol=atol), "mismatch vs reference"
    assert jnp.allclose(jnp.sum(out, axis=1), 1.0, atol=max(atol, 1e-5))


if __name__ == "__main__":
    key = jax.random.PRNGKey(0)
    k_exact, k_fast = jax.random.split(key)

    # Exact path (f32 streams, exact reciprocal) — bit-tight vs the reference.
    _run_case(k_exact, B=2, S=8, H=32, use_bf16=False, approx=False, atol=1e-5)

    # Production-style path: bf16 streamed operands + EUP approx reciprocal
    # (f32 accumulation & softmax), checked at a looser tolerance.
    _run_case(k_fast, B=8, S=16, H=32, use_bf16=True, approx=True, atol=5e-2)

    print("KERNEL_OK")
</pallas_src>

<mosaic_0001>
module attributes {stable_mosaic.version = 11 : i64} {
  func.func @_attention_kernel(%arg0: i32, %arg1: i32, %arg2: memref<2x32xf32, #tpu.memory_space<vmem>>, %arg3: memref<2x8x32xf32, #tpu.memory_space<vmem>>, %arg4: memref<32x32xf32, #tpu.memory_space<vmem>>, %arg5: memref<1x32xf32, #tpu.memory_space<vmem>>, %arg6: memref<1x2x8xf32, #tpu.memory_space<vmem>>, %arg7: memref<1x2x8xf32, #tpu.memory_space<vmem>>) attributes {dimension_semantics = [#tpu.dimension_semantics<parallel>, #tpu.dimension_semantics<arbitrary>], iteration_bounds = array<i64: 1, 1>, scalar_prefetch = 0 : i64, scratch_operands = 1 : i64, tpu.core_type = #tpu.core_type<tc>, window_params = [{transform_indices = @transform_0, window_bounds = array<i64: 2, 32>}, {transform_indices = @transform_1, window_bounds = array<i64: 2, 8, 32>}, {pipeline_mode = #tpu.pipeline_mode<synchronous>, transform_indices = @transform_2, window_bounds = array<i64: 32, 32>}, {pipeline_mode = #tpu.pipeline_mode<synchronous>, transform_indices = @transform_3, window_bounds = array<i64: 1, 32>}, {transform_indices = @transform_4, window_bounds = array<i64: 1, 2, 8>}]} {
    %c0 = arith.constant 0 : index
    %c0_0 = arith.constant 0 : index
    %c0_1 = arith.constant 0 : index
    %0 = vector.load %arg3[%c0, %c0_0, %c0_1] : memref<2x8x32xf32, #tpu.memory_space<vmem>>, vector<2x8x32xf32>
    %1 = vector.shape_cast %0 : vector<2x8x32xf32> to vector<16x32xf32>
    %c0_2 = arith.constant 0 : index
    %c0_3 = arith.constant 0 : index
    %2 = vector.load %arg4[%c0_2, %c0_3] : memref<32x32xf32, #tpu.memory_space<vmem>>, vector<32x32xf32>
    %cst = arith.constant dense<0.000000e+00> : vector<16x32xf32>
    %3 = tpu.matmul %1, %2, %cst {dimension_numbers = #tpu.dot_dimension_numbers<[1], [0], [0], [1], [0, 0, 1, 1], [], []>} : vector<16x32xf32>, vector<32x32xf32>, vector<16x32xf32> -> vector<16x32xf32>
    %4 = vector.shape_cast %3 : vector<16x32xf32> to vector<2x8x32xf32>
    %c0_4 = arith.constant 0 : index
    %c0_5 = arith.constant 0 : index
    %5 = vector.load %arg2[%c0_4, %c0_5] : memref<2x32xf32, #tpu.memory_space<vmem>>, vector<2x32xf32>
    %6 = vector.shape_cast %5 : vector<2x32xf32> to vector<2x1x32xf32>
    %7 = vector.broadcast %6 : vector<2x1x32xf32> to vector<2x8x32xf32>
    %8 = arith.addf %4, %7 : vector<2x8x32xf32>
    %cst_6 = arith.constant 0.000000e+00 : f32
    %9 = vector.broadcast %cst_6 : f32 to vector<2x8x32xf32>
    %10 = arith.maximumf %8, %9 : vector<2x8x32xf32>
    %c0_7 = arith.constant 0 : index
    %c0_8 = arith.constant 0 : index
    %11 = vector.load %arg5[%c0_7, %c0_8] : memref<1x32xf32, #tpu.memory_space<vmem>>, vector<1x32xf32>
    %12 = vector.shape_cast %11 : vector<1x32xf32> to vector<1x1x32xf32>
    %13 = vector.broadcast %12 : vector<1x1x32xf32> to vector<2x8x32xf32>
    %14 = arith.mulf %10, %13 : vector<2x8x32xf32>
    %cst_9 = arith.constant dense<0.000000e+00> : vector<2x8xf32>
    %15 = vector.multi_reduction <add>, %14, %cst_9 [2] : vector<2x8x32xf32> to vector<2x8xf32>
    %16 = arith.index_cast %arg1 : i32 to index
    %c0_10 = arith.constant 0 : index
    %c0_11 = arith.constant 0 : index
    %17 = vector.load %arg7[%16, %c0_10, %c0_11] : memref<1x2x8xf32, #tpu.memory_space<vmem>>, vector<1x2x8xf32>
    %18 = vector.shape_cast %17 : vector<1x2x8xf32> to vector<2x8xf32>
    %19 = vector.shape_cast %15 : vector<2x8xf32> to vector<1x2x8xf32>
    tpu.vector_store %arg7[%16, %c0_10, %c0_11], %19 {strides = array<i32>} : memref<1x2x8xf32, #tpu.memory_space<vmem>>, vector<1x2x8xf32>,
    %c0_i32 = arith.constant 0 : i32
    %20 = arith.cmpi eq, %arg1, %c0_i32 : i32
    %21 = arith.extui %20 : i1 to i32
    %c0_i32_12 = arith.constant 0 : i32
    %22 = arith.cmpi ne, %21, %c0_i32_12 : i32
    scf.if %22 {
      %c0_13 = arith.constant 0 : index
      %c0_14 = arith.constant 0 : index
      %c0_15 = arith.constant 0 : index
      %23 = vector.load %arg7[%c0_13, %c0_14, %c0_15] : memref<1x2x8xf32, #tpu.memory_space<vmem>>, vector<1x2x8xf32>
      %cst_16 = arith.constant dense<0xFF800000> : vector<1x2xf32>
      %24 = vector.multi_reduction <maximumf>, %23, %cst_16 [2] : vector<1x2x8xf32> to vector<1x2xf32>
      %25 = vector.shape_cast %24 : vector<1x2xf32> to vector<1x2x1xf32>
      %cst_17 = arith.constant dense<0xFF800000> : vector<2x1xf32>
      %26 = vector.multi_reduction <maximumf>, %25, %cst_17 [0] : vector<1x2x1xf32> to vector<2x1xf32>
      %27 = vector.shape_cast %26 : vector<2x1xf32> to vector<1x2x1xf32>
      %28 = vector.broadcast %27 : vector<1x2x1xf32> to vector<1x2x8xf32>
      %29 = arith.subf %23, %28 : vector<1x2x8xf32>
      %30 = math.exp %29 : vector<1x2x8xf32>
      %cst_18 = arith.constant dense<0.000000e+00> : vector<1x2xf32>
      %31 = vector.multi_reduction <add>, %30, %cst_18 [2] : vector<1x2x8xf32> to vector<1x2xf32>
      %32 = vector.shape_cast %31 : vector<1x2xf32> to vector<1x2x1xf32>
      %cst_19 = arith.constant dense<0.000000e+00> : vector<2x1xf32>
      %33 = vector.multi_reduction <add>, %32, %cst_19 [0] : vector<1x2x1xf32> to vector<2x1xf32>
      %34 = vector.shape_cast %33 : vector<2x1xf32> to vector<1x2x1xf32>
      %35 = tpu.reciprocal %34 : vector<1x2x1xf32> -> vector<1x2x1xf32>
      %36 = vector.broadcast %35 : vector<1x2x1xf32> to vector<1x2x8xf32>
      %37 = arith.mulf %30, %36 : vector<1x2x8xf32>
      %c0_20 = arith.constant 0 : index
      %c0_21 = arith.constant 0 : index
      %c0_22 = arith.constant 0 : index
      %38 = vector.load %arg6[%c0_20, %c0_21, %c0_22] : memref<1x2x8xf32, #tpu.memory_space<vmem>>, vector<1x2x8xf32>
      tpu.vector_store %arg6[%c0_20, %c0_21, %c0_22], %37 {strides = array<i32>} : memref<1x2x8xf32, #tpu.memory_space<vmem>>, vector<1x2x8xf32>,
    } else {
    }
    return
  }
  func.func @transform_0(%arg0: i32, %arg1: i32) -> (i32, i32) {
    %c0_i32 = arith.constant 0 : i32
    %c0_i32_0 = arith.constant 0 : i32
    return %arg0, %c0_i32 : i32, i32
  }
  func.func @transform_1(%arg0: i32, %arg1: i32) -> (i32, i32, i32) {
    %c0_i32 = arith.constant 0 : i32
    %c0_i32_0 = arith.constant 0 : i32
    return %arg0, %arg1, %c0_i32 : i32, i32, i32
  }
  func.func @transform_2(%arg0: i32, %arg1: i32) -> (i32, i32) {
    %c0_i32 = arith.constant 0 : i32
    %c0_i32_0 = arith.constant 0 : i32
    %c0_i32_1 = arith.constant 0 : i32
    return %c0_i32, %c0_i32_0 : i32, i32
  }
  func.func @transform_3(%arg0: i32, %arg1: i32) -> (i32, i32) {
    %c0_i32 = arith.constant 0 : i32
    %c0_i32_0 = arith.constant 0 : i32
    %c0_i32_1 = arith.constant 0 : i32
    return %c0_i32, %c0_i32_0 : i32, i32
  }
  func.func @transform_4(%arg0: i32, %arg1: i32) -> (i32, i32, i32) {
    %c0_i32 = arith.constant 0 : i32
    %c0_i32_0 = arith.constant 0 : i32
    %c0_i32_1 = arith.constant 0 : i32
    return %c0_i32, %arg0, %c0_i32_0 : i32, i32, i32
  }
}

</mosaic_0001>

<llo_original>
// kernel: tpu_custom_call.1
$region0: #{tpu_custom_call.1}
  #allocation0 [shape = 'u32[]', space=smem, size = 0x4, offset = 0x4, fixed_abs, tag = 'smem constant byte address 0x4 - core index']
  #allocation1 [shape = 'u32[144,128]{1,0:T(1,128)}', space=vmem, size = 0x12000, scoped, tag = 'internal scratch']
  #allocation2 [shape = 'f32[1,2,8]{2,1,0:T(2,128)}', space=vmem, size = 0x400, scoped, tag = 'scratch operand']
  %s0 = inlined_call_operand.hbm [shape: f32[2,32], index: 0, kind: input, shape index: {}]
  %s1 = inlined_call_operand.hbm [shape: f32[2,8,32], index: 1, kind: input, shape index: {}]
  %s2 = inlined_call_operand.hbm [shape: f32[32,32], index: 2, kind: input, shape index: {}]
  %s3 = inlined_call_operand.vmem [shape: f32[1,32], index: 3, kind: input, shape index: {}]
  %s4 = inlined_call_operand.hbm [shape: f32[1,2,8], index: 4, kind: output, shape index: {}]
  %s5 = sld [smem:[#allocation0]]
  $region42: #{tpu_custom_call.1} parent=0
    _
  %s7 = ssub.s32 1, %s5
  %s8 = scalar_select 0, %s7, %s5
  $region1: #{tpu_custom_call.1} parent=0
    #allocation3 [shape = 'u8[1024]{0}', space=vmem, size = 0x400, scoped, tag = 'input window, operand 0, single buffered']
    #allocation4 [shape = 's32[1]{0}', space=sflag, size = 0x4, scoped, tag = 'scoped memory for tpu_custom_call.1']
    #allocation5 [shape = 's32[1]{0}', space=sflag, size = 0x4, scoped, tag = 'scoped memory for tpu_custom_call.1']
    #allocation6 [shape = 'u8[8192]{0}', space=vmem, size = 0x2000, scoped, tag = 'input window, operand 1, single buffered']
    #allocation7 [shape = 's32[1]{0}', space=sflag, size = 0x4, scoped, tag = 'scoped memory for tpu_custom_call.1']
    #allocation8 [shape = 'u8[16384]{0}', space=vmem, size = 0x4000, scoped, tag = 'input window, operand 2, single buffered']
    #allocation9 [shape = 'u8[1024]{0}', space=vmem, size = 0x400, scoped, tag = 'output window, operand 0, single buffered']
    %9 = vsyncpa [#allocation4], 0
    %10 = vsyncpa [#allocation7], 0
    %11 = vsyncpa [#allocation5], 0
    // Predicated region
    $region2: #{tpu_custom_call.1} parent=1 // pred_check
      _
    $region3: #{tpu_custom_call.1} parent=1 // pred_check_branch
      %13 = sbr.rel (0) target = $region5
    $region4: #{tpu_custom_call.1} parent=1 // pred_region
      %s15 = ssub.s32 32, 32
      %16 = vsyncadd [#allocation4], %s15
      %s18 = sshll.u32 [#allocation3], 4
      %s19 = int_to_ptr.vmem [resolvable:$true] %s18
      %21 = dma.hbm_to_vmem [thread:$0]  %s0, 32, %s19, [#allocation4]
    $region5: #{tpu_custom_call.1} parent=1 // pred_fallthru
      _
    // Predicated region
    $region6: #{tpu_custom_call.1} parent=1 // pred_check
      _
    $region7: #{tpu_custom_call.1} parent=1 // pred_check_branch
      %23 = sbr.rel (0) target = $region9
    $region8: #{tpu_custom_call.1} parent=1 // pred_region
      %s25 = ssub.s32 256, 256
      %26 = vsyncadd [#allocation7], %s25
      %s27 = sshll.u32 [#allocation6], 4
      %s28 = int_to_ptr.vmem [resolvable:$true] %s27
      %33 = dma.hbm_to_vmem [thread:$0]  %s1, 256, %s28, [#allocation7], 128, 128, 8
    $region9: #{tpu_custom_call.1} parent=1 // pred_fallthru
      _
    // Predicated region
    $region10: #{tpu_custom_call.1} parent=1 // pred_check
      _
    $region11: #{tpu_custom_call.1} parent=1 // pred_check_branch
      %35 = sbr.rel (0) target = $region13
    $region12: #{tpu_custom_call.1} parent=1 // pred_region
      %s37 = ssub.s32 512, 512
      %38 = vsyncadd [#allocation7], %s37
      %s39 = sshll.u32 [#allocation8], 4
      %s40 = int_to_ptr.vmem [resolvable:$true] %s39
      %45 = dma.hbm_to_vmem [thread:$0]  %s2, 512, %s40, [#allocation7], 128, 128, 8
    $region13: #{tpu_custom_call.1} parent=1 // pred_fallthru
      _
    // Predicated region
    $region14: #{tpu_custom_call.1} parent=1 // pred_check
      _
    $region15: #{tpu_custom_call.1} parent=1 // pred_check_branch
      %47 = sbr.rel (0) target = $region17
    $region16: #{tpu_custom_call.1} parent=1 // pred_region
      _
    $region17: #{tpu_custom_call.1} parent=1 // pred_fallthru
      _
    // Predicated region
    $region18: #{tpu_custom_call.1} parent=1 // pred_check
      _
    $region19: #{tpu_custom_call.1} parent=1 // pred_check_branch
      %49 = sbr.rel (0) target = $region21
    $region20: #{tpu_custom_call.1} parent=1 // pred_region
      %50 = dma.done [#allocation4], 32
    $region21: #{tpu_custom_call.1} parent=1 // pred_fallthru
      _
    // Predicated region
    $region22: #{tpu_custom_call.1} parent=1 // pred_check
      _
    $region23: #{tpu_custom_call.1} parent=1 // pred_check_branch
      %52 = sbr.rel (0) target = $region25
    $region24: #{tpu_custom_call.1} parent=1 // pred_region
      %53 = dma.done [#allocation7], 256
    $region25: #{tpu_custom_call.1} parent=1 // pred_fallthru
      _
    // Predicated region
    $region26: #{tpu_custom_call.1} parent=1 // pred_check
      _
    $region27: #{tpu_custom_call.1} parent=1 // pred_check_branch
      %55 = sbr.rel (0) target = $region29
    $region28: #{tpu_custom_call.1} parent=1 // pred_region
      %56 = dma.done [#allocation7], 512
    $region29: #{tpu_custom_call.1} parent=1 // pred_fallthru
      _
    %v57 = vld [vmem:[#allocation6] sm:$0xff]
    %v58 = vld [vmem:[#allocation6 + $0x8] sm:$0xff]
    %v59 = vld [vmem:[#allocation8] sm:$0xff]
    %v60 = vld [vmem:[#allocation8 + $0x8] sm:$0xff]
    %v61 = vld [vmem:[#allocation8 + $0x10] sm:$0xff]
    %v62 = vld [vmem:[#allocation8 + $0x18] sm:$0xff]
    %vm63 = vcmask 261120
    %v65 = vsel %vm63, %v57, 0
    %v68 = vsel %vm63, %v58, 0
    %70 = vmatprep.subr.mxu0 0.0
    %71 = vmatpush1.msra.mxu0 %v59
    %72 = vmatprep.subr.mxu0 0.0
    %73 = vmatpush1.msra.mxu0 %v60
    %74 = vmatprep.subr.mxu0 0.0
    %75 = vmatpush1.msra.mxu0 %v61
    %76 = vmatprep.subr.mxu0 0.0
    %77 = vmatpush1.msra.mxu0 %v62
    %78 = vmatprep.subr.mxu0 0.0
    %79 = vmatpush1.msra.mxu0 0.0
    %80 = vmatprep.subr.mxu0 0.0
    %81 = vmatpush1.msra.mxu0 0.0
    %82 = vmatprep.subr.mxu0 0.0
    %83 = vmatpush1.msra.mxu0 0.0
    %84 = vmatprep.subr.mxu0 0.0
    %85 = vmatpush1.msra.mxu0 0.0
    %86 = vmatprep.subr.mxu0 0.0
    %87 = vmatpush1.msra.mxu0 0.0
    %88 = vmatprep.subr.mxu0 0.0
    %89 = vmatpush1.msra.mxu0 0.0
    %90 = vmatprep.subr.mxu0 0.0
    %91 = vmatpush1.msra.mxu0 0.0
    %92 = vmatprep.subr.mxu0 0.0
    %93 = vmatpush1.msra.mxu0 0.0
    %94 = vmatprep.subr.mxu0 0.0
    %95 = vmatpush1.msra.mxu0 0.0
    %96 = vmatprep.subr.mxu0 0.0
    %97 = vmatpush1.msra.mxu0 0.0
    %98 = vmatprep.subr.mxu0 0.0
    %99 = vmatpush1.msra.mxu0 0.0
    %100 = vmatprep.subr.mxu0 0.0
    %101 = vmatpush1.msra.mxu0 0.0
    %102 = vmatprep.subr.mxu0 0.0
    %103 = vmatpush1.msra.mxu0 0.0
    %104 = vmatprep.subr.mxu0 0.0
    %105 = vmatpush1.msra.mxu0 0.0
    %106 = vmatprep.subr.mxu0 0.0
    %107 = vmatpush1.msra.mxu0 0.0
    %108 = vmatprep.subr.mxu0 0.0
    %109 = vmatpush1.msra.mxu0 0.0
    %110 = vmatprep.subr.mxu0 0.0
    %111 = vmatpush1.msra.mxu0 0.0
    %112 = vmatprep.subr.mxu0 0.0
    %113 = vmatpush1.msra.mxu0 0.0
    %114 = vmatprep.subr.mxu0 0.0
    %115 = vmatpush1.msra.mxu0 0.0
    %116 = vmatprep.subr.mxu0 0.0
    %117 = vmatpush1.msra.mxu0 0.0
    %118 = vmatprep.subr.mxu0 0.0
    %119 = vmatpush1.msra.mxu0 0.0
    %120 = vmatprep.subr.mxu0 0.0
    %121 = vmatpush1.msra.mxu0 0.0
    %122 = vmatprep.subr.mxu0 0.0
    %123 = vmatpush1.msra.mxu0 0.0
    %124 = vmatprep.subr.mxu0 0.0
    %125 = vmatpush1.msra.mxu0 0.0
    %126 = vmatprep.subr.mxu0 0.0
    %127 = vmatpush1.msra.mxu0 0.0
    %128 = vmatprep.subr.mxu0 0.0
    %129 = vmatpush1.msra.mxu0 0.0
    %130 = vmatprep.subr.mxu0 0.0
    %131 = vmatpush1.msra.mxu0 0.0
    %132 = vmatprep.subr.mxu0 0.0
    %133 = vmatpush1.msra.mxu0 0.0
    %134 = vmatprep.mubr.f32.mxu0 0.0
    %135 = vmatmul.mubr.f32.gmra.mrb[0].mxu0 %v65
    %v136 = vpop.f32.mrb[0].mxu0
    %v137 = vadd.f32 0.0, %v136
    %v138 = vpop.f32.mrb[0].mxu0
    %139 = vmatprep.mubr.f32.mxu0 0.0
    %140 = vmatmul.mubr.f32.gmra.mrb[0].mxu0 %v68
    %v141 = vpop.f32.mrb[0].mxu0
    %v142 = vadd.f32 0.0, %v141
    %v143 = vpop.f32.mrb[0].mxu0
    %144 = vdwg.mxu0
    %v145 = vld [vmem:[#allocation3] sm:$0x3]
    %v148 = vunpack.c.l.s4 1966171168
    %v149 = vunpack.c.0.s8 %v148
    %v150 = vlaneseq
    %v151 = vshrl.u32 %v150, 7
    %v152 = vsub.s32 %v149, %v151
    %v153 = vrot.slane %v145, %v152
    %v154 = vcombine.high %v153, %v153
    %v156 = vunpack.c.l.s4 1966171168
    %v157 = vunpack.c.0.s8 %v156
    %v158 = vlaneseq
    %v159 = vshrl.u32 %v158, 7
    %v160 = vsub.s32 %v157, %v159
    %v161 = vrot.slane %v153, %v160
    %v163 = vunpack.c.l.s4 1966171168
    %v164 = vunpack.c.0.s8 %v163
    %v165 = vlaneseq
    %v166 = vshrl.u32 %v165, 7
    %v167 = vsub.s32 %v164, %v166
    %v168 = vrot.slane %v154, %v167
    %v169 = vlaneseq
    %v170 = vshrl.u32 %v169, 7
    %v171 = vsub.s32 0, %v170
    %v172 = vrot.slane %v161, %v171
    %v173 = vlaneseq
    %v174 = vshrl.u32 %v173, 7
    %v175 = vsub.s32 0, %v174
    %v176 = vrot.slane %v168, %v175
    %v179 = vadd.f32 %v137, %v172
    %v180 = vadd.f32 %v142, %v176
    %v181 = vmax.f32 %v179, 0.0
    %v182 = vmax.f32 %v180, 0.0
    %v183 = vld [vmem:[%s3] sm:$0x1]
    %v185 = vlaneseq
    %v186 = vshrl.u32 %v185, 7
    %v187 = vsub.s32 0, %v186
    %v188 = vrot.slane %v183, %v187
    %v190 = vmul.f32 %v181, %v188
    %v191 = vmul.f32 %v182, %v188
    %v192 = vsel %vm63, %v190, 0.0
    %193 = vadd.xlane.f32.xlu0 %v192
    %v194 = vpop.xlane.xlu0 %193
    %v195 = vsel %vm63, %v191, 0.0
    %196 = vadd.xlane.f32.xlu0 %v195
    %v197 = vpop.xlane.xlu0 %196
    %v200 = vlaneseq
    %v201 = vand.u32 %v200, 127
    %v202 = vlaneseq
    %v203 = vshrl.u32 %v202, 7
    %v204 = vsub.s32 %v201, %v203
    %v205 = vrot.slane %v194, %v204
    %v206 = vlaneseq
    %v207 = vshrl.u32 %v206, 7
    %v208 = vsub.s32 %v201, %v207
    %v209 = vrot.slane %v197, %v208
    %vm210 = vcmask 1041409
    %v211 = vsel %vm210, %v209, %v205
    %s213 = smul.u32 0, 2
    %s214 = scalar_lea.vmem [#allocation2], %s213
    %vm215 = vcmask 58368
    %216 = vst.msk [vmem:[%s214] sm:$0x3] %vm215, %v211
    %p217 = scmp.eq.s32.totalorder 0, 0
    // Predicated region
    $region30: #{tpu_custom_call.1} parent=1 // pred_check
      %p218 = pneg %p217
    $region31: #{tpu_custom_call.1} parent=1 // pred_check_branch
      %220 = sbr.rel (%p218) target = $region33
    $region32: #{tpu_custom_call.1} parent=1 // pred_region
      %v221 = vld [vmem:[#allocation2] sm:$0x3]
      %v222 = vsel %vm215, %v221, -inf
      %223 = vmax.xlane.f32.xlu0 %v222
      %v224 = vpop.xlane.xlu0 %223
      %v225 = vsub.f32 %v221, %v224
      %v226 = vmul.f32 %v225, 1.442695
      %v227 = vpow.pop %v226
      %v228 = vsel %vm215, %v227, 0.0
      %229 = vadd.xlane.f32.xlu0 %v228
      %v230 = vpop.xlane.xlu0 %229
      %v231 = vadd.f32 %v230, 0.0
      %v232 = vrcp.pop %v231
      %v233 = vmul.f32 %v227, %v232
      %234 = vst.msk [vmem:[#allocation9] sm:$0x3] %vm215, %v233
    $region33: #{tpu_custom_call.1} parent=1 // pred_fallthru
      _
    // Predicated region
    $region34: #{tpu_custom_call.1} parent=1 // pred_check
      _
    $region35: #{tpu_custom_call.1} parent=1 // pred_check_branch
      %236 = sbr.rel (0) target = $region37
    $region36: #{tpu_custom_call.1} parent=1 // pred_region
      %s238 = ssub.s32 32, 32
      %239 = vsyncadd [#allocation5], %s238
      %s241 = sshll.u32 [#allocation9], 4
      %s242 = int_to_ptr.vmem [resolvable:$true] %s241
      %244 = dma.vmem_to_hbm [thread:$0]  %s242, 32, %s4, [#allocation5]
    $region37: #{tpu_custom_call.1} parent=1 // pred_fallthru
      _
    // Predicated region
    $region38: #{tpu_custom_call.1} parent=1 // pred_check
      _
    $region39: #{tpu_custom_call.1} parent=1 // pred_check_branch
      %246 = sbr.rel (0) target = $region41
    $region40: #{tpu_custom_call.1} parent=1 // pred_region
      %247 = dma.done [#allocation5], 32
    $region41: #{tpu_custom_call.1} parent=1 // pred_fallthru
      _
    %248 = vsyncpa [#allocation4], 1
    %249 = vsyncpa [#allocation7], 1
    %250 = vsyncpa [#allocation5], 1

</llo_original>
